<compile_context>
chip_gen: v7x
topology: tpu7x:2x2x1
jax: 0.10.0
libtpu: 0.0.40
codegen_flags: <defaults>
</compile_context>

<pallas_src>
import functools

import jax
import jax.numpy as jnp
from jax.experimental import pallas as pl
from jax.experimental.pallas import tpu as pltpu

_LANE = 128
_TARGET_TILE_BYTES = 4 * 1024 * 1024      # per-step DMA target (~HBM roofline)
_MAX_SINGLE_PASS_TILE = 8 * 1024 * 1024   # above this per min row tile, tile S
_MAX_BLOCK_R = 8192                       # sanity cap on lane-dense output width
_MIN_ROW_STEPS = 8                        # pipeline-depth target on the row axis
_MIN_S_TILE_BYTES = 2048                  # min contiguous bytes/row per DMA burst
_MIN_PALLAS_BYTES = 256 * 1024            # below this, fused XLA reduce wins
_BASE_VMEM_LIMIT = 32 * 1024 * 1024       # small tiles => no need for half VMEM


def _round_down(v, m):
    return (v // m) * m


def _round_up(v, m):
    return ((v + m - 1) // m) * m


def _auto_tiles(r, s, itemsize):
    """Pick (block_r, block_s). block_s == s means single-pass (untiled S)."""
    row_bytes = max(s * itemsize, 1)
    # Output is lane-dense (1, block_r): block_r must be a multiple of 128 or == r.
    min_block_r = r if r < _LANE else _LANE

    if min_block_r * row_bytes <= _MAX_SINGLE_PASS_TILE:
        # Single pass over full-S rows; size rows to ~4 MiB per step and keep
        # >= _MIN_ROW_STEPS grid steps when R allows it (pipeline + 2-TC split).
        br_bytes = max(min_block_r, _TARGET_TILE_BYTES // row_bytes)
        br_steps = max(_LANE, _round_down(r // _MIN_ROW_STEPS, _LANE))
        block_r = min(br_bytes, br_steps, _MAX_BLOCK_R)
        if block_r >= r:
            return r, s
        return max(_LANE, _round_down(block_r, _LANE)), s

    # S-tiled path: block_r at its floor; block_s from the byte target with a
    # minimum contiguous-bytes-per-row floor (short row bursts hurt HBM BW).
    block_r = min_block_r
    min_block_s = min(s, _round_up(max(_LANE, _MIN_S_TILE_BYTES // itemsize), _LANE))
    block_s = _round_down(_TARGET_TILE_BYTES // (block_r * itemsize), _LANE)
    block_s = min(s, max(min_block_s, block_s))
    if block_s >= s:
        return block_r, s
    return block_r, block_s


def _row_mean_kernel(x_ref, o_ref, *, inv_s):
    # x_ref: (block_r, S) tile; o_ref: lane-dense (1, block_r) tile of means.
    # Garbage sums from Pallas-padded rows of a final partial row block land in
    # output lanes >= R and are never written back to the (1, R) array.
    x = x_ref[...].astype(jnp.float32)           # f32 accumulation (v5e-safe)
    o_ref[...] = (jnp.sum(x, axis=1) * inv_s)[None, :].astype(o_ref.dtype)


def _row_mean_tiled_kernel(x_ref, o_ref, acc_ref, *, inv_s, s_total, block_s):
    # Grid: (row blocks "parallel", S blocks "arbitrary"/last).
    # acc_ref: (block_r, 128) lane-partial f32 accumulator, persistent over k.
    # Per-step updates are pure elementwise VPU adds on 128-lane strips; the
    # single cross-lane XLU reduce + sublane->lane relayout run only at k==last.
    k = pl.program_id(1)

    @pl.when(k == 0)
    def _init():
        acc_ref[...] = jnp.zeros_like(acc_ref)

    n_strips = block_s // _LANE
    masked = (s_total % block_s) != 0
    if masked:
        lane = jax.lax.broadcasted_iota(jnp.int32, acc_ref.shape, 1)
        base = k * block_s

    acc = acc_ref[...]
    for j in range(n_strips):                    # static unroll; aligned strips
        strip = x_ref[:, pl.ds(j * _LANE, _LANE)].astype(jnp.float32)
        if masked:
            # Zero Pallas-padded lanes of the final partial S tile.
            strip = jnp.where(base + j * _LANE + lane < s_total, strip, 0.0)
        acc = acc + strip
    acc_ref[...] = acc

    @pl.when(k == pl.num_programs(1) - 1)
    def _finalize():
        row_sum = jnp.sum(acc_ref[...], axis=1)  # one XLU cross-lane reduce
        o_ref[...] = (row_sum * inv_s)[None, :].astype(o_ref.dtype)


def global_average(x, rank=2, keepdims=False, *, block_r=None, block_s=None,
                   force_pallas=False):
    """Pallas equivalent of GlobalAverage(rank, keepdims).forward(x)."""
    assert x.ndim == 2 + rank, f"expected {2 + rank}-D input, got {x.ndim}-D"
    n, c = x.shape[0], x.shape[1]
    s = 1
    for d in x.shape[2:]:
        s *= d
    r = n * c
    axes = tuple(range(2, 2 + rank))

    # torch.mean does not support integer inputs; promote them to float32.
    out_dtype = x.dtype if jnp.issubdtype(x.dtype, jnp.floating) else jnp.float32
    out_itemsize = jnp.dtype(out_dtype).itemsize

    # Tiny inputs: launch/pipeline overhead dwarfs the data movement.
    if not force_pallas and x.size * x.dtype.itemsize < _MIN_PALLAS_BYTES:
        return jnp.mean(x, axis=axes, keepdims=keepdims).astype(out_dtype)

    itemsize = x.dtype.itemsize
    auto_r, auto_s = _auto_tiles(r, s, itemsize)
    if block_r is None:
        block_r = auto_r
    if block_s is None:
        block_s = auto_s

    # Sanitize (possibly user-supplied) tiles against Mosaic tiling rules:
    # input block (block_r, block_s): sublane dim multiple of 8 or == r, lane
    # dim multiple of 128 or == s; lane-dense output block (1, block_r):
    # block_r multiple of 128 or == r.
    block_r = min(int(block_r), r)
    if block_r != r:
        block_r = min(r, max(_LANE, _round_down(block_r, _LANE)))
    block_s = min(int(block_s), s)
    if block_s != s:
        block_s = min(s, max(_LANE, _round_down(block_s, _LANE)))

    inv_s = 1.0 / float(s)
    x2d = x.reshape(r, s)       # rows = (n, c), cols = flattened spatial dims
    num_r = pl.cdiv(r, block_r)

    # Bandwidth-heavy cost hint for the XLA scheduler.
    cost = pl.CostEstimate(flops=int(r) * int(s), transcendentals=0,
                           bytes_accessed=int(r) * int(s) * itemsize
                           + int(r) * out_itemsize)

    # VMEM limit: 32 MiB base; add exact headroom for the actual tile choice
    # (double-buffered input + possible f32 upcast copy + accumulator/output).
    in_tile_bytes = block_r * block_s * itemsize
    work_f32 = 0 if x.dtype == jnp.float32 else block_r * block_s * 4
    acc_bytes = (block_r * _LANE * 4) if block_s != s else 0
    needed = (2 * in_tile_bytes + work_f32 + acc_bytes
              + 2 * block_r * out_itemsize + (2 << 20))
    vmem_limit = int(min(max(_BASE_VMEM_LIMIT, needed), 120 * 1024 * 1024))

    if block_s == s:
        # Single-pass: each grid step reduces a full-S row tile.
        out2d = pl.pallas_call(
            functools.partial(_row_mean_kernel, inv_s=inv_s),
            out_shape=jax.ShapeDtypeStruct((1, r), out_dtype),
            grid_spec=pltpu.PrefetchScalarGridSpec(
                num_scalar_prefetch=0,
                grid=(num_r,),
                in_specs=[pl.BlockSpec((block_r, s), lambda i: (i, 0))],
                out_specs=pl.BlockSpec((1, block_r), lambda i: (0, i)),
            ),
            compiler_params=pltpu.CompilerParams(
                dimension_semantics=("parallel",),
                vmem_limit_bytes=vmem_limit),
            cost_estimate=cost,
        )(x2d)
    else:
        # Two-axis grid: accumulate lane-partial row sums over S tiles in VMEM.
        num_s = pl.cdiv(s, block_s)
        out2d = pl.pallas_call(
            functools.partial(_row_mean_tiled_kernel, inv_s=inv_s,
                              s_total=s, block_s=block_s),
            out_shape=jax.ShapeDtypeStruct((1, r), out_dtype),
            grid_spec=pltpu.PrefetchScalarGridSpec(
                num_scalar_prefetch=0,
                grid=(num_r, num_s),
                in_specs=[pl.BlockSpec((block_r, block_s),
                                       lambda i, k: (i, k))],
                out_specs=pl.BlockSpec((1, block_r), lambda i, k: (0, i)),
                scratch_shapes=[pltpu.VMEM((block_r, _LANE), jnp.float32)],
            ),
            compiler_params=pltpu.CompilerParams(
                dimension_semantics=("parallel", "arbitrary"),
                vmem_limit_bytes=vmem_limit),
            cost_estimate=cost,
        )(x2d)

    out = out2d.reshape(n, c)
    if keepdims:
        out = out.reshape((n, c) + (1,) * rank)
    return out


if __name__ == "__main__":
    key = jax.random.PRNGKey(0)
    k0, k1, k2, k3, k4 = jax.random.split(key, 5)

    # 1) Module-default smoke shape (tiny -> fast jnp.mean path).
    x = jax.random.normal(k0, (2, 4, 16, 16), dtype=jnp.float32)
    y = jax.block_until_ready(global_average(x, rank=2, keepdims=False))
    assert y.shape == (2, 4), y.shape
    assert jnp.allclose(y, jnp.mean(x, axis=(2, 3)), atol=1e-5, rtol=1e-5)

    y_kd = jax.block_until_ready(global_average(x, rank=2, keepdims=True))
    assert y_kd.shape == (2, 4, 1, 1), y_kd.shape
    assert jnp.allclose(y_kd, jnp.mean(x, axis=(2, 3), keepdims=True),
                        atol=1e-5, rtol=1e-5)

    # 2) Same tiny shape, forced through the Pallas single-pass kernel.
    y_p = jax.block_until_ready(
        global_average(x, rank=2, keepdims=False, force_pallas=True))
    assert y_p.shape == (2, 4), y_p.shape
    assert jnp.allclose(y_p, jnp.mean(x, axis=(2, 3)), atol=1e-5, rtol=1e-5)

    # 3) Natural Pallas path: r = 512 rows -> block_r = 128, 4 "parallel"
    #    grid steps, lane-dense multi-block output.
    xb = jax.random.normal(k1, (4, 128, 32, 32), dtype=jnp.float32)
    yb = jax.block_until_ready(global_average(xb, rank=2, keepdims=False))
    assert yb.shape == (4, 128), yb.shape
    assert jnp.allclose(yb, jnp.mean(xb, axis=(2, 3)), atol=1e-4, rtol=1e-4)

    # 4) Force the two-axis (S-tiled) accumulator path with a non-divisor
    #    S tile (960 % 512 != 0) to exercise the masked partial tile.
    xc = jax.random.normal(k2, (2, 4, 24, 40), dtype=jnp.float32)
    yc = jax.block_until_ready(
        global_average(xc, rank=2, keepdims=False,
                       force_pallas=True, block_s=512))
    assert yc.shape == (2, 4), yc.shape
    assert jnp.allclose(yc, jnp.mean(xc, axis=(2, 3)), atol=1e-5, rtol=1e-5)

    # 5) bf16 input with a partial final row block (r=300, block_r=128):
    #    padded-row garbage must never reach the (1, R) output.
    xd = jax.random.normal(k3, (3, 100, 32, 32), dtype=jnp.bfloat16)
    yd = jax.block_until_ready(global_average(xd, rank=2, keepdims=False))
    assert yd.shape == (3, 100), yd.shape
    ref_d = jnp.mean(xd.astype(jnp.float32), axis=(2, 3))
    assert jnp.allclose(yd.astype(jnp.float32), ref_d, atol=5e-3, rtol=2e-2)

    # 6) Integer input: promoted to float32 output (torch.mean-style).
    xe = jax.random.randint(k4, (2, 4, 16, 16), minval=-5, maxval=6,
                            dtype=jnp.int32)
    ye = jax.block_until_ready(
        global_average(xe, rank=2, keepdims=False, force_pallas=True))
    assert ye.shape == (2, 4) and ye.dtype == jnp.float32
    assert jnp.allclose(ye, jnp.mean(xe.astype(jnp.float32), axis=(2, 3)),
                        atol=1e-5, rtol=1e-5)

    print("KERNEL_OK")
</pallas_src>

<mosaic_0001>
module attributes {stable_mosaic.version = 11 : i64} {
  func.func @_row_mean_kernel(%arg0: i32, %arg1: memref<8x256xf32, #tpu.memory_space<vmem>>, %arg2: memref<1x8xf32, #tpu.memory_space<vmem>>) attributes {dimension_semantics = [#tpu.dimension_semantics<parallel>], iteration_bounds = array<i64: 1>, scalar_prefetch = 0 : i64, scratch_operands = 0 : i64, tpu.core_type = #tpu.core_type<tc>, window_params = [{transform_indices = @transform_0, window_bounds = array<i64: 8, 256>}, {transform_indices = @transform_1, window_bounds = array<i64: 1, 8>}]} {
    %c0 = arith.constant 0 : index
    %c0_0 = arith.constant 0 : index
    %0 = vector.load %arg1[%c0, %c0_0] : memref<8x256xf32, #tpu.memory_space<vmem>>, vector<8x256xf32>
    %cst = arith.constant dense<0.000000e+00> : vector<8xf32>
    %1 = vector.multi_reduction <add>, %0, %cst [1] : vector<8x256xf32> to vector<8xf32>
    %cst_1 = arith.constant 3.906250e-03 : f32
    %2 = vector.broadcast %cst_1 : f32 to vector<8xf32>
    %3 = arith.mulf %1, %2 : vector<8xf32>
    %4 = vector.shape_cast %3 : vector<8xf32> to vector<1x8xf32>
    %c0_2 = arith.constant 0 : index
    %c0_3 = arith.constant 0 : index
    %5 = vector.load %arg2[%c0_2, %c0_3] : memref<1x8xf32, #tpu.memory_space<vmem>>, vector<1x8xf32>
    tpu.vector_store %arg2[%c0_2, %c0_3], %4 {strides = array<i32>} : memref<1x8xf32, #tpu.memory_space<vmem>>, vector<1x8xf32>,
    return
  }
  func.func @transform_0(%arg0: i32) -> (i32, i32) {
    %c0_i32 = arith.constant 0 : i32
    %c0_i32_0 = arith.constant 0 : i32
    return %arg0, %c0_i32 : i32, i32
  }
  func.func @transform_1(%arg0: i32) -> (i32, i32) {
    %c0_i32 = arith.constant 0 : i32
    %c0_i32_0 = arith.constant 0 : i32
    return %c0_i32, %arg0 : i32, i32
  }
}

</mosaic_0001>

<llo_original>
// kernel: tpu_custom_call.1
$region0: #{tpu_custom_call.1}
  #allocation0 [shape = 'u32[]', space=smem, size = 0x4, offset = 0x4, fixed_abs, tag = 'smem constant byte address 0x4 - core index']
  #allocation1 [shape = 'u32[144,128]{1,0:T(1,128)}', space=vmem, size = 0x12000, scoped, tag = 'internal scratch']
  %s0 = inlined_call_operand.hbm [shape: f32[8,256], index: 0, kind: input, shape index: {}]
  %s1 = inlined_call_operand.hbm [shape: f32[1,8], index: 1, kind: output, shape index: {}]
  %s2 = sld [smem:[#allocation0]]
  $region18: #{tpu_custom_call.1} parent=0
    _
  %s4 = ssub.s32 1, %s2
  %s5 = scalar_select 0, %s4, %s2
  $region1: #{tpu_custom_call.1} parent=0
    #allocation2 [shape = 'u8[8192]{0}', space=vmem, size = 0x2000, scoped, tag = 'input window, operand 0, single buffered']
    #allocation3 [shape = 's32[1]{0}', space=sflag, size = 0x4, scoped, tag = 'scoped memory for tpu_custom_call.1']
    #allocation4 [shape = 's32[1]{0}', space=sflag, size = 0x4, scoped, tag = 'scoped memory for tpu_custom_call.1']
    #allocation5 [shape = 'u8[512]{0}', space=vmem, size = 0x400, scoped, tag = 'output window, operand 0, single buffered']
    %6 = vsyncpa [#allocation3], 0
    %7 = vsyncpa [#allocation4], 0
    // Predicated region
    $region2: #{tpu_custom_call.1} parent=1 // pred_check
      _
    $region3: #{tpu_custom_call.1} parent=1 // pred_check_branch
      %9 = sbr.rel (0) target = $region5
    $region4: #{tpu_custom_call.1} parent=1 // pred_region
      %s11 = ssub.s32 256, 256
      %12 = vsyncadd [#allocation3], %s11
      %s14 = sshll.u32 [#allocation2], 4
      %s15 = int_to_ptr.vmem [resolvable:$true] %s14
      %17 = dma.hbm_to_vmem [thread:$0]  %s0, 256, %s15, [#allocation3]
    $region5: #{tpu_custom_call.1} parent=1 // pred_fallthru
      _
    // Predicated region
    $region6: #{tpu_custom_call.1} parent=1 // pred_check
      _
    $region7: #{tpu_custom_call.1} parent=1 // pred_check_branch
      %19 = sbr.rel (0) target = $region9
    $region8: #{tpu_custom_call.1} parent=1 // pred_region
      %20 = dma.done [#allocation3], 256
    $region9: #{tpu_custom_call.1} parent=1 // pred_fallthru
      _
    %v21 = vld [vmem:[#allocation2] sm:$0xff]
    %v22 = vld [vmem:[#allocation2 + $0x8] sm:$0xff]
    %v23 = vadd.f32 %v21, %v22
    %24 = vadd.xlane.f32.xlu0 %v23
    %v25 = vpop.xlane.xlu0 %24
    %v26 = vmul.f32 %v25, 0.00390625
    %v28 = vlaneseq
    %v29 = vand.u32 %v28, 127
    %v30 = vlaneseq
    %v31 = vshrl.u32 %v30, 7
    %v32 = vsub.s32 %v29, %v31
    %v33 = vrot.slane %v26, %v32
    %vm35 = vcmask 57344
    %36 = vst.msk [vmem:[#allocation5] sm:$0x1] %vm35, %v33
    // Predicated region
    $region10: #{tpu_custom_call.1} parent=1 // pred_check
      _
    $region11: #{tpu_custom_call.1} parent=1 // pred_check_branch
      %38 = sbr.rel (0) target = $region13
    $region12: #{tpu_custom_call.1} parent=1 // pred_region
      %s40 = ssub.s32 16, 16
      %41 = vsyncadd [#allocation4], %s40
      %s43 = sshll.u32 [#allocation5], 4
      %s44 = int_to_ptr.vmem [resolvable:$true] %s43
      %46 = dma.vmem_to_hbm [thread:$0]  %s44, 16, %s1, [#allocation4]
    $region13: #{tpu_custom_call.1} parent=1 // pred_fallthru
      _
    // Predicated region
    $region14: #{tpu_custom_call.1} parent=1 // pred_check
      _
    $region15: #{tpu_custom_call.1} parent=1 // pred_check_branch
      %48 = sbr.rel (0) target = $region17
    $region16: #{tpu_custom_call.1} parent=1 // pred_region
      %49 = dma.done [#allocation4], 16
    $region17: #{tpu_custom_call.1} parent=1 // pred_fallthru
      _
    %50 = vsyncpa [#allocation3], 1
    %51 = vsyncpa [#allocation4], 1

</llo_original>
